<compile_context>
chip_gen: v5e
topology: v5e:2x2
jax: 0.10.0
libtpu: 0.0.40
codegen_flags: <defaults>
</compile_context>

<pallas_src>
import functools
import math

import jax
import jax.numpy as jnp
import numpy as np
from jax.experimental import pallas as pl
from jax.experimental.pallas import tpu as pltpu


def _round_up(x, m):
    return ((x + m - 1) // m) * m


def _patch_embed_kernel(p_ref, w_ref, b_ref, o_ref):
    """One row-tile of the patch-embedding matmul.

    p_ref : (tm, Kp)   flattened patches, bf16 (Kp = pad128(C_in*ph*pw))
    w_ref : (Kp, Ep)   conv weight, reshaped/transposed/padded, bf16 (resident)
    b_ref : (1, Ep)    conv bias, f32, zero-padded (resident)
    o_ref : (tm, Ep)
    """
    acc = jnp.dot(p_ref[...], w_ref[...], preferred_element_type=jnp.float32)
    o_ref[...] = (acc + b_ref[...]).astype(o_ref.dtype)


def prepare_patch_embedding_params(weight, bias, *, compute_dtype=jnp.bfloat16):
    """Repack the conv weight/bias once (outside the per-step hot path).

    weight : (E, C_in, ph, pw)  PyTorch Conv2d layout
    bias   : (E,)
    Returns (w_pad, b_pad, embed_dim, k_dim) where
      w_pad : (Kp, Ep) bf16, Kp = pad128(C_in*ph*pw), Ep = pad128(E)
      b_pad : (1, Ep)  f32
    """
    E = int(weight.shape[0])
    K = int(np.prod(weight.shape[1:]))
    Kp = _round_up(K, 128)
    Ep = _round_up(E, 128)
    w_mat = weight.reshape(E, K).T.astype(compute_dtype)          # (K, E): out = P @ w_mat
    w_pad = jnp.zeros((Kp, Ep), compute_dtype).at[:K, :E].set(w_mat)
    b_pad = jnp.zeros((1, Ep), jnp.float32).at[0, :E].set(bias.astype(jnp.float32))
    return w_pad, b_pad, E, K


@functools.partial(
    jax.jit, static_argnames=("patch_size", "embed_dim", "k_dim", "tile_m")
)
def patch_embedding(x, w_pad, b_pad, *, patch_size, embed_dim, k_dim, tile_m=512):
    """Equivalent of PatchEmbedding.forward(x) -> (B, num_patches, embed_dim)."""
    B, Cin, H, W = x.shape
    ph, pw = patch_size
    assert H % ph == 0 and W % pw == 0, "image dims must be multiples of patch_size"
    nh, nw = H // ph, W // pw
    M = B * nh * nw
    Kp, Ep = w_pad.shape
    K = k_dim

    # im2col (layout only), materialized in bf16.  Row (b, pi, pj) is that patch
    # flattened in (c, kh, kw) order -> matches weight.reshape(E, -1).T.
    # allow_input_fusion=[True,...] below lets XLA fuse this transpose/cast into
    # the kernel's input DMA instead of a separate HBM round trip.
    patches = (
        x.reshape(B, Cin, nh, ph, nw, pw)
        .transpose(0, 2, 4, 1, 3, 5)
        .reshape(M, K)
        .astype(w_pad.dtype)
    )
    if Kp != K:  # keep the lane dim of the patches unmasked (v5e especially)
        patches = jnp.pad(patches, ((0, 0), (0, Kp - K)))

    # Row-tile selection: whole problem if tiny; otherwise big 256-aligned tiles
    # with at least 2 programs so both v7x TensorCores run and the patch-tile
    # DMA pipelines behind the matmul.
    if M <= 512:
        tm = M
    else:
        n_prog = max(2, pl.cdiv(M, tile_m))
        tm = min(_round_up(pl.cdiv(M, n_prog), 256), tile_m)
    grid = (pl.cdiv(M, tm),)

    out_itemsize = jnp.dtype(x.dtype).itemsize
    # Explicit VMEM budget: double-buffered patches/out tiles + resident weight/bias.
    vmem_bytes = (2 * tm * Kp * 2 + 2 * Kp * Ep * 2 + 2 * Ep * 4
                  + 2 * tm * Ep * out_itemsize + (4 << 20))
    vmem_bytes = int(min(max(vmem_bytes, 16 << 20), 64 << 20))

    cost = pl.CostEstimate(
        flops=2 * M * Kp * Ep,
        transcendentals=0,
        bytes_accessed=M * Kp * 2 + Kp * Ep * 2 + Ep * 4 + M * Ep * out_itemsize,
    )

    out = pl.pallas_call(
        _patch_embed_kernel,
        out_shape=jax.ShapeDtypeStruct((M, Ep), x.dtype),
        grid=grid,
        in_specs=[
            pl.BlockSpec((tm, Kp), lambda i: (i, 0)),   # streamed patch rows
            pl.BlockSpec((Kp, Ep), lambda i: (0, 0)),   # weight resident across grid
            pl.BlockSpec((1, Ep), lambda i: (0, 0)),    # bias resident across grid
        ],
        out_specs=pl.BlockSpec((tm, Ep), lambda i: (i, 0)),
        compiler_params=pltpu.CompilerParams(
            dimension_semantics=("parallel",),
            vmem_limit_bytes=vmem_bytes,
            allow_input_fusion=[True, False, False],
        ),
        cost_estimate=cost,
    )(patches, w_pad, b_pad)

    # Strip the lane padding and restore (B, num_patches, embed_dim).
    return out[:, :embed_dim].reshape(B, nh * nw, embed_dim)


def _reference(x, weight, bias, patch_size):
    """Pure-JAX reference of the PyTorch forward (strided conv + flatten/transpose)."""
    ph, pw = patch_size
    y = jax.lax.conv_general_dilated(
        x, weight, window_strides=(ph, pw), padding="VALID",
        dimension_numbers=("NCHW", "OIHW", "NCHW"),
        precision=jax.lax.Precision.HIGHEST,
    )
    y = y + bias.reshape(1, -1, 1, 1)
    B, E, nh, nw = y.shape
    return y.reshape(B, E, nh * nw).transpose(0, 2, 1)   # flatten(2).transpose(1,2)


if __name__ == "__main__":
    # Shapes consistent with the module: patch_size = (16, 8) from the source file.
    B, Cin, H, W = 2, 4, 16, 16
    ph, pw = 16, 8
    E = 32                                    # embed_dim

    key = jax.random.PRNGKey(0)
    kx, kw, kb = jax.random.split(key, 3)
    x = jax.random.normal(kx, (B, Cin, H, W), jnp.float32)

    fan_in = Cin * ph * pw
    bound = 1.0 / math.sqrt(fan_in)           # PyTorch Conv2d default init range
    weight = jax.random.uniform(kw, (E, Cin, ph, pw), jnp.float32, -bound, bound)
    bias = jax.random.uniform(kb, (E,), jnp.float32, -bound, bound)

    # Weight repacking done once, outside the hot path.
    w_pad, b_pad, embed_dim, k_dim = prepare_patch_embedding_params(weight, bias)

    out = jax.block_until_ready(
        patch_embedding(x, w_pad, b_pad, patch_size=(ph, pw),
                        embed_dim=embed_dim, k_dim=k_dim)
    )
    ref = jax.block_until_ready(_reference(x, weight, bias, (ph, pw)))

    assert out.shape == (B, (H // ph) * (W // pw), E)
    # bf16 MXU inputs with f32 accumulation -> loosened tolerance vs f32 reference.
    np.testing.assert_allclose(np.asarray(out), np.asarray(ref), rtol=2e-2, atol=2e-2)

    print("KERNEL_OK")
</pallas_src>

<mosaic_0001>
module attributes {stable_mosaic.version = 11 : i64} {
  func.func @_patch_embed_kernel(%arg0: i32, %arg1: memref<4x512xbf16, #tpu.memory_space<vmem>>, %arg2: memref<512x128xbf16, #tpu.memory_space<vmem>>, %arg3: memref<1x128xf32, #tpu.memory_space<vmem>>, %arg4: memref<4x128xf32, #tpu.memory_space<vmem>>) attributes {dimension_semantics = [#tpu.dimension_semantics<parallel>], iteration_bounds = array<i64: 1>, scalar_prefetch = 0 : i64, scratch_operands = 0 : i64, tpu.core_type = #tpu.core_type<tc>, window_params = [{transform_indices = @transform_0, window_bounds = array<i64: 4, 512>}, {pipeline_mode = #tpu.pipeline_mode<synchronous>, transform_indices = @transform_1, window_bounds = array<i64: 512, 128>}, {pipeline_mode = #tpu.pipeline_mode<synchronous>, transform_indices = @transform_2, window_bounds = array<i64: 1, 128>}, {transform_indices = @transform_3, window_bounds = array<i64: 4, 128>}]} {
    %c0 = arith.constant 0 : index
    %c0_0 = arith.constant 0 : index
    %0 = vector.load %arg1[%c0, %c0_0] : memref<4x512xbf16, #tpu.memory_space<vmem>>, vector<4x512xbf16>
    %c0_1 = arith.constant 0 : index
    %c0_2 = arith.constant 0 : index
    %1 = vector.load %arg2[%c0_1, %c0_2] : memref<512x128xbf16, #tpu.memory_space<vmem>>, vector<512x128xbf16>
    %cst = arith.constant dense<0.000000e+00> : vector<4x128xf32>
    %2 = tpu.matmul %0, %1, %cst {dimension_numbers = #tpu.dot_dimension_numbers<[1], [0], [0], [1], [0, 0, 1, 1], [], []>} : vector<4x512xbf16>, vector<512x128xbf16>, vector<4x128xf32> -> vector<4x128xf32>
    %c0_3 = arith.constant 0 : index
    %c0_4 = arith.constant 0 : index
    %3 = vector.load %arg3[%c0_3, %c0_4] : memref<1x128xf32, #tpu.memory_space<vmem>>, vector<1x128xf32>
    %4 = vector.broadcast %3 : vector<1x128xf32> to vector<4x128xf32>
    %5 = arith.addf %2, %4 : vector<4x128xf32>
    %c0_5 = arith.constant 0 : index
    %c0_6 = arith.constant 0 : index
    %6 = vector.load %arg4[%c0_5, %c0_6] : memref<4x128xf32, #tpu.memory_space<vmem>>, vector<4x128xf32>
    tpu.vector_store %arg4[%c0_5, %c0_6], %5 {strides = array<i32>} : memref<4x128xf32, #tpu.memory_space<vmem>>, vector<4x128xf32>,
    return
  }
  func.func @transform_0(%arg0: i32) -> (i32, i32) {
    %c0_i32 = arith.constant 0 : i32
    %c0_i32_0 = arith.constant 0 : i32
    return %arg0, %c0_i32 : i32, i32
  }
  func.func @transform_1(%arg0: i32) -> (i32, i32) {
    %c0_i32 = arith.constant 0 : i32
    %c0_i32_0 = arith.constant 0 : i32
    %c0_i32_1 = arith.constant 0 : i32
    return %c0_i32, %c0_i32_0 : i32, i32
  }
  func.func @transform_2(%arg0: i32) -> (i32, i32) {
    %c0_i32 = arith.constant 0 : i32
    %c0_i32_0 = arith.constant 0 : i32
    %c0_i32_1 = arith.constant 0 : i32
    return %c0_i32, %c0_i32_0 : i32, i32
  }
  func.func @transform_3(%arg0: i32) -> (i32, i32) {
    %c0_i32 = arith.constant 0 : i32
    %c0_i32_0 = arith.constant 0 : i32
    return %arg0, %c0_i32 : i32, i32
  }
}

</mosaic_0001>

<llo_original>
// kernel: patch_embedding.1
$region0: #{patch_embedding.1}
  #allocation0 [shape = 'u32[]', space=smem, size = 0x4, offset = 0x4, fixed_abs, tag = 'smem constant byte address 0x4 - core index']
  #allocation1 [shape = 'u32[72,128]{1,0:T(1,128)}', space=vmem, size = 0x9000, scoped, tag = 'internal scratch']
  %s0 = inlined_call_operand.vmem [shape: bf16[4,512], index: 0, kind: input, shape index: {}]
  %s1 = inlined_call_operand.vmem [shape: bf16[512,128], index: 1, kind: input, shape index: {}]
  %s2 = inlined_call_operand.vmem [shape: f32[1,128], index: 2, kind: input, shape index: {}]
  %s3 = inlined_call_operand.hbm [shape: f32[4,128], index: 3, kind: output, shape index: {}]
  %s4 = sld [smem:[#allocation0]]
  $region22: #{patch_embedding.1} parent=0
    _
  %s6 = ssub.s32 1, %s4
  %s7 = scalar_select 0, %s6, %s4
  $region1: #{patch_embedding.1} parent=0
    #allocation2 [shape = 'u8[2048]{0}', space=vmem, size = 0x800, scoped, tag = 'output window, operand 0, single buffered']
    #allocation3 [shape = 's32[1]{0}', space=sflag, size = 0x4, scoped, tag = 'scoped memory for patch_embedding.1']
    %8 = vsyncpa [#allocation3], 0
    // Predicated region
    $region2: #{patch_embedding.1} parent=1 // pred_check
      _
    $region3: #{patch_embedding.1} parent=1 // pred_check_branch
      %10 = sbr.rel (0) target = $region5
    $region4: #{patch_embedding.1} parent=1 // pred_region
      _
    $region5: #{patch_embedding.1} parent=1 // pred_fallthru
      _
    // Predicated region
    $region6: #{patch_embedding.1} parent=1 // pred_check
      _
    $region7: #{patch_embedding.1} parent=1 // pred_check_branch
      %12 = sbr.rel (0) target = $region9
    $region8: #{patch_embedding.1} parent=1 // pred_region
      _
    $region9: #{patch_embedding.1} parent=1 // pred_fallthru
      _
    // Predicated region
    $region10: #{patch_embedding.1} parent=1 // pred_check
      _
    $region11: #{patch_embedding.1} parent=1 // pred_check_branch
      %14 = sbr.rel (0) target = $region13
    $region12: #{patch_embedding.1} parent=1 // pred_region
      _
    $region13: #{patch_embedding.1} parent=1 // pred_fallthru
      _
    %v15 = vld [vmem:[%s0] sm:$0xff]
    %v16 = vld [vmem:[%s1] sm:$0xf]
    %v17 = vld [vmem:[%s1 + $0x4] sm:$0xf]
    %v18 = vld [vmem:[%s1 + $0x8] sm:$0xf]
    %v19 = vld [vmem:[%s1 + $0xc] sm:$0xf]
    %v20 = vld [vmem:[%s1 + $0x10] sm:$0xf]
    %v21 = vld [vmem:[%s1 + $0x14] sm:$0xf]
    %v22 = vld [vmem:[%s1 + $0x18] sm:$0xf]
    %v23 = vld [vmem:[%s1 + $0x1c] sm:$0xf]
    %v24 = vld [vmem:[%s1 + $0x20] sm:$0xf]
    %v25 = vld [vmem:[%s1 + $0x24] sm:$0xf]
    %v26 = vld [vmem:[%s1 + $0x28] sm:$0xf]
    %v27 = vld [vmem:[%s1 + $0x2c] sm:$0xf]
    %v28 = vld [vmem:[%s1 + $0x30] sm:$0xf]
    %v29 = vld [vmem:[%s1 + $0x34] sm:$0xf]
    %v30 = vld [vmem:[%s1 + $0x38] sm:$0xf]
    %v31 = vld [vmem:[%s1 + $0x3c] sm:$0xf]
    %v32 = vld [vmem:[%s1 + $0x40] sm:$0xf]
    %v33 = vld [vmem:[%s1 + $0x44] sm:$0xf]
    %v34 = vld [vmem:[%s1 + $0x48] sm:$0xf]
    %v35 = vld [vmem:[%s1 + $0x4c] sm:$0xf]
    %v36 = vld [vmem:[%s1 + $0x50] sm:$0xf]
    %v37 = vld [vmem:[%s1 + $0x54] sm:$0xf]
    %v38 = vld [vmem:[%s1 + $0x58] sm:$0xf]
    %v39 = vld [vmem:[%s1 + $0x5c] sm:$0xf]
    %v40 = vld [vmem:[%s1 + $0x60] sm:$0xf]
    %v41 = vld [vmem:[%s1 + $0x64] sm:$0xf]
    %v42 = vld [vmem:[%s1 + $0x68] sm:$0xf]
    %v43 = vld [vmem:[%s1 + $0x6c] sm:$0xf]
    %v44 = vld [vmem:[%s1 + $0x70] sm:$0xf]
    %v45 = vld [vmem:[%s1 + $0x74] sm:$0xf]
    %v46 = vld [vmem:[%s1 + $0x78] sm:$0xf]
    %v47 = vld [vmem:[%s1 + $0x7c] sm:$0xf]
    %v48 = vld [vmem:[%s1 + $0x80] sm:$0xf]
    %v49 = vld [vmem:[%s1 + $0x84] sm:$0xf]
    %v50 = vld [vmem:[%s1 + $0x88] sm:$0xf]
    %v51 = vld [vmem:[%s1 + $0x8c] sm:$0xf]
    %v52 = vld [vmem:[%s1 + $0x90] sm:$0xf]
    %v53 = vld [vmem:[%s1 + $0x94] sm:$0xf]
    %v54 = vld [vmem:[%s1 + $0x98] sm:$0xf]
    %v55 = vld [vmem:[%s1 + $0x9c] sm:$0xf]
    %v56 = vld [vmem:[%s1 + $0xa0] sm:$0xf]
    %v57 = vld [vmem:[%s1 + $0xa4] sm:$0xf]
    %v58 = vld [vmem:[%s1 + $0xa8] sm:$0xf]
    %v59 = vld [vmem:[%s1 + $0xac] sm:$0xf]
    %v60 = vld [vmem:[%s1 + $0xb0] sm:$0xf]
    %v61 = vld [vmem:[%s1 + $0xb4] sm:$0xf]
    %v62 = vld [vmem:[%s1 + $0xb8] sm:$0xf]
    %v63 = vld [vmem:[%s1 + $0xbc] sm:$0xf]
    %v64 = vld [vmem:[%s1 + $0xc0] sm:$0xf]
    %v65 = vld [vmem:[%s1 + $0xc4] sm:$0xf]
    %v66 = vld [vmem:[%s1 + $0xc8] sm:$0xf]
    %v67 = vld [vmem:[%s1 + $0xcc] sm:$0xf]
    %v68 = vld [vmem:[%s1 + $0xd0] sm:$0xf]
    %v69 = vld [vmem:[%s1 + $0xd4] sm:$0xf]
    %v70 = vld [vmem:[%s1 + $0xd8] sm:$0xf]
    %v71 = vld [vmem:[%s1 + $0xdc] sm:$0xf]
    %v72 = vld [vmem:[%s1 + $0xe0] sm:$0xf]
    %v73 = vld [vmem:[%s1 + $0xe4] sm:$0xf]
    %v74 = vld [vmem:[%s1 + $0xe8] sm:$0xf]
    %v75 = vld [vmem:[%s1 + $0xec] sm:$0xf]
    %v76 = vld [vmem:[%s1 + $0xf0] sm:$0xf]
    %v77 = vld [vmem:[%s1 + $0xf4] sm:$0xf]
    %v78 = vld [vmem:[%s1 + $0xf8] sm:$0xf]
    %v79 = vld [vmem:[%s1 + $0xfc] sm:$0xf]
    %v80 = vld [vmem:[%s2] sm:$0x1]
    %v82 = vperm.slane %v80, 0
    %85 = vst [vmem:[#allocation1] ss:$4 sm:$0xff] %v15
    %v86 = vld.sshfl [vmem:[#allocation1] sm:$0xff pattern:$0x73625140]
    %v87 = vld.sshfl [vmem:[#allocation1 + $0x8] sm:$0xff pattern:$0x73625140]
    %v88 = vld.sshfl [vmem:[#allocation1 + $0x10] sm:$0xff pattern:$0x73625140]
    %v89 = vld.sshfl [vmem:[#allocation1 + $0x18] sm:$0xff pattern:$0x73625140]
    %v158 = vunpack.c.l.b16 %v16
    %v159 = vunpack.c.l.b16 %v17
    %v160 = vunpack.c.l.b16 %v18
    %v161 = vunpack.c.l.b16 %v19
    %v162 = vunpack.c.l.b16 %v20
    %v163 = vunpack.c.l.b16 %v21
    %v164 = vunpack.c.l.b16 %v22
    %v165 = vunpack.c.l.b16 %v23
    %v166 = vunpack.c.l.b16 %v24
    %v167 = vunpack.c.l.b16 %v25
    %v168 = vunpack.c.l.b16 %v26
    %v169 = vunpack.c.l.b16 %v27
    %v170 = vunpack.c.l.b16 %v28
    %v171 = vunpack.c.l.b16 %v29
    %v172 = vunpack.c.l.b16 %v30
    %v173 = vunpack.c.l.b16 %v31
    %v174 = vunpack.c.l.b16 %v32
    %v175 = vunpack.c.l.b16 %v33
    %v176 = vunpack.c.l.b16 %v34
    %v177 = vunpack.c.l.b16 %v35
    %v178 = vunpack.c.l.b16 %v36
    %v179 = vunpack.c.l.b16 %v37
    %v180 = vunpack.c.l.b16 %v38
    %v181 = vunpack.c.l.b16 %v39
    %v182 = vunpack.c.l.b16 %v40
    %v183 = vunpack.c.l.b16 %v41
    %v184 = vunpack.c.l.b16 %v42
    %v185 = vunpack.c.l.b16 %v43
    %v186 = vunpack.c.l.b16 %v44
    %v187 = vunpack.c.l.b16 %v45
    %v188 = vunpack.c.l.b16 %v46
    %v189 = vunpack.c.l.b16 %v47
    %v190 = vunpack.c.l.b16 %v48
    %v191 = vunpack.c.l.b16 %v49
    %v192 = vunpack.c.l.b16 %v50
    %v193 = vunpack.c.l.b16 %v51
    %v194 = vunpack.c.l.b16 %v52
    %v195 = vunpack.c.l.b16 %v53
    %v196 = vunpack.c.l.b16 %v54
    %v197 = vunpack.c.l.b16 %v55
    %v198 = vunpack.c.l.b16 %v56
    %v199 = vunpack.c.l.b16 %v57
    %v200 = vunpack.c.l.b16 %v58
    %v201 = vunpack.c.l.b16 %v59
    %v202 = vunpack.c.l.b16 %v60
    %v203 = vunpack.c.l.b16 %v61
    %v204 = vunpack.c.l.b16 %v62
    %v205 = vunpack.c.l.b16 %v63
    %v206 = vunpack.c.l.b16 %v64
    %v207 = vunpack.c.l.b16 %v65
    %v208 = vunpack.c.l.b16 %v66
    %v209 = vunpack.c.l.b16 %v67
    %v210 = vunpack.c.l.b16 %v68
    %v211 = vunpack.c.l.b16 %v69
    %v212 = vunpack.c.l.b16 %v70
    %v213 = vunpack.c.l.b16 %v71
    %v214 = vunpack.c.l.b16 %v72
    %v215 = vunpack.c.l.b16 %v73
    %v216 = vunpack.c.l.b16 %v74
    %v217 = vunpack.c.l.b16 %v75
    %v218 = vunpack.c.l.b16 %v76
    %v219 = vunpack.c.l.b16 %v77
    %v220 = vunpack.c.l.b16 %v78
    %v221 = vunpack.c.l.b16 %v79
    %v222 = vpack.c.b16 %v159, %v158
    %v223 = vpack.c.b16 %v161, %v160
    %v224 = vpack.c.b16 %v163, %v162
    %v225 = vpack.c.b16 %v165, %v164
    %v226 = vpack.c.b16 %v167, %v166
    %v227 = vpack.c.b16 %v169, %v168
    %v228 = vpack.c.b16 %v171, %v170
    %v229 = vpack.c.b16 %v173, %v172
    %v230 = vpack.c.b16 %v175, %v174
    %v231 = vpack.c.b16 %v177, %v176
    %v232 = vpack.c.b16 %v179, %v178
    %v233 = vpack.c.b16 %v181, %v180
    %v234 = vpack.c.b16 %v183, %v182
    %v235 = vpack.c.b16 %v185, %v184
    %v236 = vpack.c.b16 %v187, %v186
    %v237 = vpack.c.b16 %v189, %v188
    %v238 = vpack.c.b16 %v191, %v190
    %v239 = vpack.c.b16 %v193, %v192
    %v240 = vpack.c.b16 %v195, %v194
    %v241 = vpack.c.b16 %v197, %v196
    %v242 = vpack.c.b16 %v199, %v198
    %v243 = vpack.c.b16 %v201, %v200
    %v244 = vpack.c.b16 %v203, %v202
    %v245 = vpack.c.b16 %v205, %v204
    %v246 = vpack.c.b16 %v207, %v206
    %v247 = vpack.c.b16 %v209, %v208
    %v248 = vpack.c.b16 %v211, %v210
    %v249 = vpack.c.b16 %v213, %v212
    %v250 = vpack.c.b16 %v215, %v214
    %v251 = vpack.c.b16 %v217, %v216
    %v252 = vpack.c.b16 %v219, %v218
    %v253 = vpack.c.b16 %v221, %v220
    %286 = vmatpush.bf16.msra.mxu0 %v229
    %287 = vmatpush.bf16.msra.mxu0 %v228
    %288 = vmatpush.bf16.msra.mxu0 %v227
    %289 = vmatpush.bf16.msra.mxu0 %v226
    %290 = vmatpush.bf16.msra.mxu0 %v225
    %291 = vmatpush.bf16.msra.mxu0 %v224
    %292 = vmatpush.bf16.msra.mxu0 %v223
    %293 = vmatpush.bf16.msra.mxu0 %v222
    %294 = vmatmul.bf16.gmra.mxu0 %v86
    %v295 = vpop.f32.mrf.mxu0
    %v296 = vadd.f32 %v82, %v295
    %v297 = vpop.f32.mrf.mxu0
    %298 = vdwg.mxu0
    %299 = vmatpush.bf16.msra.mxu0 %v237
    %300 = vmatpush.bf16.msra.mxu0 %v236
    %301 = vmatpush.bf16.msra.mxu0 %v235
    %302 = vmatpush.bf16.msra.mxu0 %v234
    %303 = vmatpush.bf16.msra.mxu0 %v233
    %304 = vmatpush.bf16.msra.mxu0 %v232
    %305 = vmatpush.bf16.msra.mxu0 %v231
    %306 = vmatpush.bf16.msra.mxu0 %v230
    %307 = vmatmul.bf16.gmra.mxu0 %v87
    %v308 = vpop.f32.mrf.mxu0
    %v309 = vadd.f32 %v296, %v308
    %v310 = vpop.f32.mrf.mxu0
    %311 = vdwg.mxu0
    %312 = vmatpush.bf16.msra.mxu0 %v245
    %313 = vmatpush.bf16.msra.mxu0 %v244
    %314 = vmatpush.bf16.msra.mxu0 %v243
    %315 = vmatpush.bf16.msra.mxu0 %v242
    %316 = vmatpush.bf16.msra.mxu0 %v241
    %317 = vmatpush.bf16.msra.mxu0 %v240
    %318 = vmatpush.bf16.msra.mxu0 %v239
    %319 = vmatpush.bf16.msra.mxu0 %v238
    %320 = vmatmul.bf16.gmra.mxu0 %v88
    %v321 = vpop.f32.mrf.mxu0
    %v322 = vadd.f32 %v309, %v321
    %v323 = vpop.f32.mrf.mxu0
    %324 = vdwg.mxu0
    %325 = vmatpush.bf16.msra.mxu0 %v253
    %326 = vmatpush.bf16.msra.mxu0 %v252
    %327 = vmatpush.bf16.msra.mxu0 %v251
    %328 = vmatpush.bf16.msra.mxu0 %v250
    %329 = vmatpush.bf16.msra.mxu0 %v249
    %330 = vmatpush.bf16.msra.mxu0 %v248
    %331 = vmatpush.bf16.msra.mxu0 %v247
    %332 = vmatpush.bf16.msra.mxu0 %v246
    %333 = vmatmul.bf16.gmra.mxu0 %v89
    %v334 = vpop.f32.mrf.mxu0
    %v335 = vadd.f32 %v322, %v334
    %v336 = vpop.f32.mrf.mxu0
    %337 = vdwg.mxu0
    %338 = vst [vmem:[#allocation2] sm:$0xf] %v335
    // Predicated region
    $region14: #{patch_embedding.1} parent=1 // pred_check
      _
    $region15: #{patch_embedding.1} parent=1 // pred_check_branch
      %340 = sbr.rel (0) target = $region17
    $region16: #{patch_embedding.1} parent=1 // pred_region
      %342 = vsyncadd [#allocation3], 0
      %s344 = sshll.u32 [#allocation2], 4
      %s345 = int_to_ptr.vmem [resolvable:$true] %s344
      %s346 = sshll.u32 %s3, 4
      %s347 = int_to_ptr.hbm [resolvable:$true] %s346
      %349 = dma.vmem_to_hbm [thread:$0]  %s345, 64, %s347, [#allocation3]
    $region17: #{patch_embedding.1} parent=1 // pred_fallthru
      _
    // Predicated region
    $region18: #{patch_embedding.1} parent=1 // pred_check
      _
    $region19: #{patch_embedding.1} parent=1 // pred_check_branch
      %351 = sbr.rel (0) target = $region21
    $region20: #{patch_embedding.1} parent=1 // pred_region
      %353 = dma.done [#allocation3], 64
    $region21: #{patch_embedding.1} parent=1 // pred_fallthru
      _
    %354 = vsyncpa [#allocation3], 1

</llo_original>
